<compile_context>
chip_gen: v7x
topology: tpu7x:2x2x1
jax: 0.10.0
libtpu: 0.0.40
codegen_flags: <defaults>
</compile_context>

<pallas_src>
import functools

import jax
import jax.numpy as jnp
from jax.experimental import pallas as pl
from jax.experimental.pallas import tpu as pltpu

_LANE = 128


def _round_up(n: int, m: int) -> int:
    return ((n + m - 1) // m) * m


def _cdiv(a: int, b: int) -> int:
    return -(-a // b)


def _vmem_cap_bytes() -> int:
    """~85% of this generation's physical VMEM (v5e/v6e: 128 MiB, v7x: 64 MiB)."""
    try:
        return int(0.85 * pltpu.get_tpu_info().vmem_capacity_bytes)
    except Exception:
        return 48 << 20  # conservative fallback that still fits v7x


# ---------------------------------------------------------------------------
# Kernels
# ---------------------------------------------------------------------------
def _probe_kernel(x_ref, w1_ref, b1_ref, w2_ref, b2_ref, o_ref):
    """out = relu(x @ w1 + b1) @ w2 + b2 with the full feature dim resident.

    x_ref : [tb, F]   (bf16 or f32)     w1_ref: [F, H]  (bf16 or f32)
    b1_ref: [1, H] f32                  w2_ref: [H, Cp] f32
    b2_ref: [1, Cp] f32                 o_ref : [tb, Cp] f32
    """
    h = jnp.dot(x_ref[...], w1_ref[...], preferred_element_type=jnp.float32)
    h = jnp.maximum(h + b1_ref[...], 0.0)
    y = jnp.dot(h, w2_ref[...], preferred_element_type=jnp.float32) + b2_ref[...]
    o_ref[...] = y.astype(o_ref.dtype)


def _probe_kernel_kblocked(x_ref, w1_ref, b1_ref, w2_ref, b2_ref, o_ref, h_acc):
    """Feature(K)-blocked variant: accumulate h, finish on the last K step.

    x_ref : [tb, tk]    w1_ref: [tk, H]    h_acc: VMEM [tb, H] f32 scratch
    """
    k = pl.program_id(1)

    @pl.when(k == 0)
    def _():
        h_acc[...] = jnp.zeros_like(h_acc)

    h_acc[...] += jnp.dot(x_ref[...], w1_ref[...],
                          preferred_element_type=jnp.float32)

    @pl.when(k == pl.num_programs(1) - 1)
    def _():
        h = jnp.maximum(h_acc[...] + b1_ref[...], 0.0)
        y = jnp.dot(h, w2_ref[...], preferred_element_type=jnp.float32) + b2_ref[...]
        o_ref[...] = y.astype(o_ref.dtype)


# ---------------------------------------------------------------------------
# Wrapper
# ---------------------------------------------------------------------------
@functools.partial(
    jax.jit, static_argnames=("block_batch", "block_features", "compute_dtype"))
def activation_probe_forward(x, w1_t, b1, w2_t, b2, *, block_batch=None,
                             block_features=None, compute_dtype=jnp.bfloat16):
    """x: [B, F]; w1_t: [F, H]; b1: [H]; w2_t: [H, C]; b2: [C]  ->  [B, C] f32."""
    B, F = x.shape
    H = w1_t.shape[1]
    C = w2_t.shape[1]
    out_dtype = jnp.float32  # keep accumulation + output f32 even for bf16 streams

    cap = _vmem_cap_bytes()

    # Stream the dominant operands (x, w1) in a narrow dtype: the kernel is
    # HBM-bound, so fewer bytes is the main lever.  Second-stage operands stay
    # f32 (they are tiny: H, H*Cp, Cp).
    if compute_dtype is not None and x.dtype != compute_dtype:
        x = x.astype(compute_dtype)
    if compute_dtype is not None and w1_t.dtype != compute_dtype:
        w1_t = w1_t.astype(compute_dtype)
    xb = jnp.dtype(x.dtype).itemsize
    ob = jnp.dtype(out_dtype).itemsize

    # Lane-dense class dim: pad only the small arrays (w2, b2), never x.
    # (For F >> 128 this write stream is negligible; for tiny-F probes an
    # unpadded (B, C) output block could be benchmarked instead.)
    Cp = _round_up(C, _LANE)
    if Cp != C:
        w2_t = jnp.pad(w2_t, ((0, 0), (0, Cp - C)))
        b2 = jnp.pad(b2, ((0, Cp - C),))
    w2_t = w2_t.astype(jnp.float32)
    b1_2d = b1.reshape(1, H).astype(jnp.float32)
    b2_2d = b2.reshape(1, Cp).astype(jnp.float32)

    # Batch tile: as large as VMEM allows (1024 rows on 128-MiB chips, 512 on
    # v7x), aligned for the packed dtype, and with >= 2 grid steps when B
    # allows so both TensorCores of a v7x chip get work.
    align = 16 if xb < 4 else 8
    if block_batch is None:
        block_batch = 1024 if cap >= (80 << 20) else 512
    tb = max(align, min(block_batch, _round_up(B, align)))
    tb = (tb // align) * align
    if B > align and _cdiv(B, tb) < 2:
        tb = _round_up(_cdiv(B, 2), align)

    slack = 4 << 20  # headroom for Mosaic internal scratch

    def simple_bytes(t):
        return (2 * t * F * xb                 # x tile, double buffered
                + 2 * t * Cp * ob              # out tile, double buffered
                + F * H * xb                   # w1, single buffered (Buffered(1))
                + (H + H * Cp + Cp) * 4        # b1 / w2 / b2, single buffered
                + slack)

    cost = pl.CostEstimate(
        flops=2 * B * F * H + 2 * B * H * Cp,
        transcendentals=0,
        bytes_accessed=B * F * xb + B * Cp * ob + F * H * xb
        + (H + H * Cp + Cp) * 4,
    )

    # Path selection: keep w1 fully resident when it (plus a >=128-row x tile)
    # fits the VMEM budget; otherwise block the feature (K) dimension.
    if block_features is not None:
        use_kblock = F > block_features
    else:
        use_kblock = simple_bytes(min(tb, 128)) > cap

    if not use_kblock:
        while tb > align and simple_bytes(tb) > cap:
            tb = max(align, (tb // 2) // align * align)
        vmem_limit = int(min(max(simple_bytes(tb), 32 << 20), cap))

        out = pl.pallas_call(
            _probe_kernel,
            out_shape=jax.ShapeDtypeStruct((B, Cp), out_dtype),
            grid_spec=pltpu.PrefetchScalarGridSpec(
                num_scalar_prefetch=0,
                grid=(_cdiv(B, tb),),
                in_specs=[
                    pl.BlockSpec((tb, F), lambda i: (i, 0)),          # x tile
                    pl.BlockSpec((F, H), lambda i: (0, 0),
                                 pipeline_mode=pl.Buffered(1)),       # w1 (resident)
                    pl.BlockSpec((1, H), lambda i: (0, 0),
                                 pipeline_mode=pl.Buffered(1)),       # b1
                    pl.BlockSpec((H, Cp), lambda i: (0, 0),
                                 pipeline_mode=pl.Buffered(1)),       # w2
                    pl.BlockSpec((1, Cp), lambda i: (0, 0),
                                 pipeline_mode=pl.Buffered(1)),       # b2
                ],
                out_specs=pl.BlockSpec((tb, Cp), lambda i: (i, 0)),
            ),
            compiler_params=pltpu.CompilerParams(
                dimension_semantics=("parallel",),
                vmem_limit_bytes=vmem_limit,
            ),
            cost_estimate=cost,
        )(x, w1_t, b1_2d, w2_t, b2_2d)
    else:
        # K-blocked path for very large feature dims.  Pad F to a 128 multiple
        # only if needed (real residual streams are already 128-aligned).
        Fp = _round_up(F, _LANE)
        if Fp != F:
            x = jnp.pad(x, ((0, 0), (0, Fp - F)))
            w1_t = jnp.pad(w1_t, ((0, Fp - F), (0, 0)))
        tk_target = block_features if block_features is not None else 2048
        tk_target = max(_LANE, min(_round_up(tk_target, _LANE), Fp))
        tk = _LANE
        t = _LANE
        while t <= tk_target:            # largest multiple of 128 dividing Fp
            if Fp % t == 0:
                tk = t
            t += _LANE

        def kblock_bytes(t):
            return (2 * t * tk * xb            # x tile, double buffered
                    + 2 * tk * H * xb          # w1 K-slab, double buffered
                    + 2 * t * Cp * ob          # out tile, double buffered
                    + t * H * 4                # f32 hidden accumulator scratch
                    + (H + H * Cp + Cp) * 4    # b1 / w2 / b2, single buffered
                    + slack)

        while tb > align and kblock_bytes(tb) > cap:
            tb = max(align, (tb // 2) // align * align)
        vmem_limit = int(min(max(kblock_bytes(tb), 32 << 20), cap))

        out = pl.pallas_call(
            _probe_kernel_kblocked,
            out_shape=jax.ShapeDtypeStruct((B, Cp), out_dtype),
            grid_spec=pltpu.PrefetchScalarGridSpec(
                num_scalar_prefetch=0,
                grid=(_cdiv(B, tb), Fp // tk),
                in_specs=[
                    pl.BlockSpec((tb, tk), lambda i, k: (i, k)),      # x tile
                    pl.BlockSpec((tk, H), lambda i, k: (k, 0)),       # w1 K-slab
                    pl.BlockSpec((1, H), lambda i, k: (0, 0),
                                 pipeline_mode=pl.Buffered(1)),       # b1
                    pl.BlockSpec((H, Cp), lambda i, k: (0, 0),
                                 pipeline_mode=pl.Buffered(1)),       # w2
                    pl.BlockSpec((1, Cp), lambda i, k: (0, 0),
                                 pipeline_mode=pl.Buffered(1)),       # b2
                ],
                out_specs=pl.BlockSpec((tb, Cp), lambda i, k: (i, 0)),
                scratch_shapes=[pltpu.VMEM((tb, H), jnp.float32)],
            ),
            compiler_params=pltpu.CompilerParams(
                dimension_semantics=("parallel", "arbitrary"),
                vmem_limit_bytes=vmem_limit,
            ),
            cost_estimate=cost,
        )(x, w1_t, b1_2d, w2_t, b2_2d)

    if Cp != C:
        out = out[:, :C]
    return out


def init_probe_params(key, num_input_features, num_classes, hidden_size=128,
                      dtype=jnp.float32):
    """Deterministic init mirroring nn.Linear's default (Kaiming-uniform-ish)."""
    k1, k2, k3, k4 = jax.random.split(key, 4)
    bound1 = 1.0 / jnp.sqrt(num_input_features)
    bound2 = 1.0 / jnp.sqrt(hidden_size)
    # Stored already transposed: [in, out]
    w1_t = jax.random.uniform(k1, (num_input_features, hidden_size),
                              minval=-bound1, maxval=bound1, dtype=dtype)
    b1 = jax.random.uniform(k2, (hidden_size,),
                            minval=-bound1, maxval=bound1, dtype=dtype)
    w2_t = jax.random.uniform(k3, (hidden_size, num_classes),
                              minval=-bound2, maxval=bound2, dtype=dtype)
    b2 = jax.random.uniform(k4, (num_classes,),
                            minval=-bound2, maxval=bound2, dtype=dtype)
    return w1_t, b1, w2_t, b2


def _reference(x, w1_t, b1, w2_t, b2, compute_dtype=jnp.bfloat16):
    """Plain-JAX reference with the same bf16 rounding of the streamed operands."""
    xr = x.astype(compute_dtype).astype(jnp.float32)
    w1r = w1_t.astype(compute_dtype).astype(jnp.float32)
    h = jnp.maximum(xr @ w1r + b1, 0.0)
    return h @ w2_t + b2


if __name__ == "__main__":
    # Small shapes consistent with the module: features=32, hidden=128
    # (module default), num_classes=4.  Batch 256 with a 128-row tile gives a
    # 2-step parallel grid (exercises the pipeline / both TCs on v7x).
    B, F, H, C = 256, 32, 128, 4
    key = jax.random.PRNGKey(0)
    kx, kp = jax.random.split(key)
    x = jax.random.normal(kx, (B, F), dtype=jnp.float32)
    w1_t, b1, w2_t, b2 = init_probe_params(kp, F, C, H)

    out = activation_probe_forward(x, w1_t, b1, w2_t, b2, block_batch=128)
    out = jax.block_until_ready(out)
    ref = _reference(x, w1_t, b1, w2_t, b2)
    assert out.shape == (B, C)
    assert jnp.allclose(out, ref, atol=2e-2, rtol=2e-2), "resident-path mismatch"

    # Also exercise the feature(K)-blocked path used for large residual streams.
    B2, F2 = 64, 256
    kx2, kp2 = jax.random.split(jax.random.PRNGKey(0), 2)
    x2 = jax.random.normal(kx2, (B2, F2), dtype=jnp.float32)
    w1b, b1b, w2b, b2b = init_probe_params(kp2, F2, C, H)
    out2 = activation_probe_forward(x2, w1b, b1b, w2b, b2b, block_features=128)
    out2 = jax.block_until_ready(out2)
    ref2 = _reference(x2, w1b, b1b, w2b, b2b)
    assert out2.shape == (B2, C)
    assert jnp.allclose(out2, ref2, atol=2e-2, rtol=2e-2), "k-blocked mismatch"

    print("KERNEL_OK")
</pallas_src>

<mosaic_0001>
module attributes {stable_mosaic.version = 11 : i64} {
  func.func @_probe_kernel(%arg0: i32, %arg1: memref<128x32xbf16, #tpu.memory_space<vmem>>, %arg2: memref<32x128xbf16, #tpu.memory_space<vmem>>, %arg3: memref<1x128xf32, #tpu.memory_space<vmem>>, %arg4: memref<128x128xf32, #tpu.memory_space<vmem>>, %arg5: memref<1x128xf32, #tpu.memory_space<vmem>>, %arg6: memref<128x128xf32, #tpu.memory_space<vmem>>) attributes {dimension_semantics = [#tpu.dimension_semantics<parallel>], iteration_bounds = array<i64: 2>, scalar_prefetch = 0 : i64, scratch_operands = 0 : i64, tpu.core_type = #tpu.core_type<tc>, window_params = [{transform_indices = @transform_0, window_bounds = array<i64: 128, 32>}, {pipeline_mode = #tpu.pipeline_mode<synchronous>, transform_indices = @transform_1, window_bounds = array<i64: 32, 128>}, {pipeline_mode = #tpu.pipeline_mode<synchronous>, transform_indices = @transform_2, window_bounds = array<i64: 1, 128>}, {pipeline_mode = #tpu.pipeline_mode<synchronous>, transform_indices = @transform_3, window_bounds = array<i64: 128, 128>}, {pipeline_mode = #tpu.pipeline_mode<synchronous>, transform_indices = @transform_4, window_bounds = array<i64: 1, 128>}, {transform_indices = @transform_5, window_bounds = array<i64: 128, 128>}]} {
    %c0 = arith.constant 0 : index
    %c0_0 = arith.constant 0 : index
    %0 = vector.load %arg1[%c0, %c0_0] : memref<128x32xbf16, #tpu.memory_space<vmem>>, vector<128x32xbf16>
    %c0_1 = arith.constant 0 : index
    %c0_2 = arith.constant 0 : index
    %1 = vector.load %arg2[%c0_1, %c0_2] : memref<32x128xbf16, #tpu.memory_space<vmem>>, vector<32x128xbf16>
    %cst = arith.constant dense<0.000000e+00> : vector<128x128xf32>
    %2 = tpu.matmul %0, %1, %cst {dimension_numbers = #tpu.dot_dimension_numbers<[1], [0], [0], [1], [0, 0, 1, 1], [], []>} : vector<128x32xbf16>, vector<32x128xbf16>, vector<128x128xf32> -> vector<128x128xf32>
    %c0_3 = arith.constant 0 : index
    %c0_4 = arith.constant 0 : index
    %3 = vector.load %arg3[%c0_3, %c0_4] : memref<1x128xf32, #tpu.memory_space<vmem>>, vector<1x128xf32>
    %4 = vector.broadcast %3 : vector<1x128xf32> to vector<128x128xf32>
    %5 = arith.addf %2, %4 : vector<128x128xf32>
    %cst_5 = arith.constant 0.000000e+00 : f32
    %6 = vector.broadcast %cst_5 : f32 to vector<128x128xf32>
    %7 = arith.maximumf %5, %6 : vector<128x128xf32>
    %c0_6 = arith.constant 0 : index
    %c0_7 = arith.constant 0 : index
    %8 = vector.load %arg4[%c0_6, %c0_7] : memref<128x128xf32, #tpu.memory_space<vmem>>, vector<128x128xf32>
    %cst_8 = arith.constant dense<0.000000e+00> : vector<128x128xf32>
    %9 = tpu.matmul %7, %8, %cst_8 {dimension_numbers = #tpu.dot_dimension_numbers<[1], [0], [0], [1], [0, 0, 1, 1], [], []>} : vector<128x128xf32>, vector<128x128xf32>, vector<128x128xf32> -> vector<128x128xf32>
    %c0_9 = arith.constant 0 : index
    %c0_10 = arith.constant 0 : index
    %10 = vector.load %arg5[%c0_9, %c0_10] : memref<1x128xf32, #tpu.memory_space<vmem>>, vector<1x128xf32>
    %11 = vector.broadcast %10 : vector<1x128xf32> to vector<128x128xf32>
    %12 = arith.addf %9, %11 : vector<128x128xf32>
    %c0_11 = arith.constant 0 : index
    %c0_12 = arith.constant 0 : index
    %13 = vector.load %arg6[%c0_11, %c0_12] : memref<128x128xf32, #tpu.memory_space<vmem>>, vector<128x128xf32>
    tpu.vector_store %arg6[%c0_11, %c0_12], %12 {strides = array<i32>} : memref<128x128xf32, #tpu.memory_space<vmem>>, vector<128x128xf32>,
    return
  }
  func.func @transform_0(%arg0: i32) -> (i32, i32) {
    %c0_i32 = arith.constant 0 : i32
    %c0_i32_0 = arith.constant 0 : i32
    return %arg0, %c0_i32 : i32, i32
  }
  func.func @transform_1(%arg0: i32) -> (i32, i32) {
    %c0_i32 = arith.constant 0 : i32
    %c0_i32_0 = arith.constant 0 : i32
    %c0_i32_1 = arith.constant 0 : i32
    return %c0_i32, %c0_i32_0 : i32, i32
  }
  func.func @transform_2(%arg0: i32) -> (i32, i32) {
    %c0_i32 = arith.constant 0 : i32
    %c0_i32_0 = arith.constant 0 : i32
    %c0_i32_1 = arith.constant 0 : i32
    return %c0_i32, %c0_i32_0 : i32, i32
  }
  func.func @transform_3(%arg0: i32) -> (i32, i32) {
    %c0_i32 = arith.constant 0 : i32
    %c0_i32_0 = arith.constant 0 : i32
    %c0_i32_1 = arith.constant 0 : i32
    return %c0_i32, %c0_i32_0 : i32, i32
  }
  func.func @transform_4(%arg0: i32) -> (i32, i32) {
    %c0_i32 = arith.constant 0 : i32
    %c0_i32_0 = arith.constant 0 : i32
    %c0_i32_1 = arith.constant 0 : i32
    return %c0_i32, %c0_i32_0 : i32, i32
  }
  func.func @transform_5(%arg0: i32) -> (i32, i32) {
    %c0_i32 = arith.constant 0 : i32
    %c0_i32_0 = arith.constant 0 : i32
    return %arg0, %c0_i32 : i32, i32
  }
}

</mosaic_0001>

<llo_original>
// kernel: activation_probe_forward.1
$region0: #{activation_probe_forward.1}
  #allocation0 [shape = 'u32[]', space=smem, size = 0x4, offset = 0x4, fixed_abs, tag = 'smem constant byte address 0x4 - core index']
  #allocation1 [shape = 'u32[144,128]{1,0:T(1,128)}', space=vmem, size = 0x12000, scoped, tag = 'internal scratch']
  %s0 = inlined_call_operand.vmem [shape: bf16[256,32], index: 0, kind: input, shape index: {}]
  %s1 = inlined_call_operand.vmem [shape: bf16[32,128], index: 1, kind: input, shape index: {}]
  %s2 = inlined_call_operand.vmem [shape: f32[1,128], index: 2, kind: input, shape index: {}]
  %s3 = inlined_call_operand.vmem [shape: f32[128,128], index: 3, kind: input, shape index: {}]
  %s4 = inlined_call_operand.vmem [shape: f32[1,128], index: 4, kind: input, shape index: {}]
  %s5 = inlined_call_operand.vmem [shape: f32[256,128], index: 5, kind: output, shape index: {}]
  %s6 = sld [smem:[#allocation0]]
  $region53: #{activation_probe_forward.1} parent=0
    _
  %s8 = ssub.s32 1, %s6
  %s9 = scalar_select 0, %s8, %s6
  loop: start=0, step=1, limit=4
  $region2: #{activation_probe_forward.1} parent=0 // loop_pre_header
    _
  $region3: #{activation_probe_forward.1} parent=0 // loop_header
    %s11 = sphi 0, %s15
    %p12 = scmp.ge.s32.totalorder %s11, 4
    %s21 = sphi 0, %s23
    %s24 = sphi 0, %s21
    %s25 = sphi 0, %s24
    %s41 = sphi 0, %s25
    %s45 = sphi 0, %s45
    %s47 = sphi 0, %s45
    %s48 = sphi 0, %s47
    %s62 = sphi 0, %s48
    %s66 = sphi 0, %s66
    %s68 = sphi 0, %s66
    %s69 = sphi 0, %s68
    %s83 = sphi 0, %s69
    %s87 = sphi 0, %s87
    %s89 = sphi 0, %s87
    %s90 = sphi 0, %s89
    %s104 = sphi 0, %s90
    %s108 = sphi 0, %s108
    %s110 = sphi 0, %s108
    %s111 = sphi 0, %s110
    %s125 = sphi 0, %s111
    %s131 = sphi 0, %s133
    %s134 = sphi 0, %s131
    %s135 = sphi 0, %s134
    %s151 = sphi 0, %s135
  $region4: #{activation_probe_forward.1} parent=0 // loop_header_branch
    %14 = sbr.rel (%p12) target = $region8
  $region5: #{activation_probe_forward.1} parent=0 // loop_body
    %s16 = ssub.s32 %s11, 1
    %s17 = ssub.s32 %s11, 2
    %s18 = sadd.s32 %s11, 1
    %s19 = ssub.s32 %s11, %s18
    %p20 = scmp.eq.s32.totalorder %s19, 0
    %s22 = sadd.s32 %s21, 1
    %s23 = scalar_select %p20, %s21, %s22
    %p26 = pneg %p20
    %p27 = scmp.eq.s32.totalorder %s11, 1
    %p28 = por %p26, %p27
    %p29 = scmp.ne.s32.totalorder %s21, %s24
    %p30 = scmp.eq.s32.totalorder %s11, 0
    %p31 = por %p29, %p30
    %p32 = scmp.ne.s32.totalorder %s21, %s24
    %p33 = scmp.eq.s32.totalorder %s16, 1
    %p34 = por %p32, %p33
    %p35 = scmp.ne.s32.totalorder %s24, %s25
    %p36 = scmp.eq.s32.totalorder %s16, 0
    %p37 = por %p35, %p36
    %p38 = scmp.ne.s32.totalorder %s24, %s25
    %p39 = scmp.eq.s32.totalorder %s17, 1
    %p40 = por %p38, %p39
    %p42 = scmp.ne.s32.totalorder %s25, %s41
    %p43 = scmp.eq.s32.totalorder %s17, 0
    %p44 = por %p42, %p43
    %s46 = sadd.s32 %s45, 1
    %p49 = scmp.eq.s32.totalorder %s11, 1
    %p50 = scmp.ne.s32.totalorder %s45, %s47
    %p51 = scmp.eq.s32.totalorder %s11, 0
    %p52 = por %p50, %p51
    %p53 = scmp.ne.s32.totalorder %s45, %s47
    %p54 = scmp.eq.s32.totalorder %s16, 1
    %p55 = por %p53, %p54
    %p56 = scmp.ne.s32.totalorder %s47, %s48
    %p57 = scmp.eq.s32.totalorder %s16, 0
    %p58 = por %p56, %p57
    %p59 = scmp.ne.s32.totalorder %s47, %s48
    %p60 = scmp.eq.s32.totalorder %s17, 1
    %p61 = por %p59, %p60
    %p63 = scmp.ne.s32.totalorder %s48, %s62
    %p64 = scmp.eq.s32.totalorder %s17, 0
    %p65 = por %p63, %p64
    %s67 = sadd.s32 %s66, 1
    %p70 = scmp.eq.s32.totalorder %s11, 1
    %p71 = scmp.ne.s32.totalorder %s66, %s68
    %p72 = scmp.eq.s32.totalorder %s11, 0
    %p73 = por %p71, %p72
    %p74 = scmp.ne.s32.totalorder %s66, %s68
    %p75 = scmp.eq.s32.totalorder %s16, 1
    %p76 = por %p74, %p75
    %p77 = scmp.ne.s32.totalorder %s68, %s69
    %p78 = scmp.eq.s32.totalorder %s16, 0
    %p79 = por %p77, %p78
    %p80 = scmp.ne.s32.totalorder %s68, %s69
    %p81 = scmp.eq.s32.totalorder %s17, 1
    %p82 = por %p80, %p81
    %p84 = scmp.ne.s32.totalorder %s69, %s83
    %p85 = scmp.eq.s32.totalorder %s17, 0
    %p86 = por %p84, %p85
    %s88 = sadd.s32 %s87, 1
    %p91 = scmp.eq.s32.totalorder %s11, 1
    %p92 = scmp.ne.s32.totalorder %s87, %s89
    %p93 = scmp.eq.s32.totalorder %s11, 0
    %p94 = por %p92, %p93
    %p95 = scmp.ne.s32.totalorder %s87, %s89
    %p96 = scmp.eq.s32.totalorder %s16, 1
    %p97 = por %p95, %p96
    %p98 = scmp.ne.s32.totalorder %s89, %s90
    %p99 = scmp.eq.s32.totalorder %s16, 0
    %p100 = por %p98, %p99
    %p101 = scmp.ne.s32.totalorder %s89, %s90
    %p102 = scmp.eq.s32.totalorder %s17, 1
    %p103 = por %p101, %p102
    %p105 = scmp.ne.s32.totalorder %s90, %s104
    %p106 = scmp.eq.s32.totalorder %s17, 0
    %p107 = por %p105, %p106
    %s109 = sadd.s32 %s108, 1
    %p112 = scmp.eq.s32.totalorder %s11, 1
    %p113 = scmp.ne.s32.totalorder %s108, %s110
    %p114 = scmp.eq.s32.totalorder %s11, 0
    %p115 = por %p113, %p114
    %p116 = scmp.ne.s32.totalorder %s108, %s110
    %p117 = scmp.eq.s32.totalorder %s16, 1
    %p118 = por %p116, %p117
    %p119 = scmp.ne.s32.totalorder %s110, %s111
    %p120 = scmp.eq.s32.totalorder %s16, 0
    %p121 = por %p119, %p120
    %p122 = scmp.ne.s32.totalorder %s110, %s111
    %p123 = scmp.eq.s32.totalorder %s17, 1
    %p124 = por %p122, %p123
    %p126 = scmp.ne.s32.totalorder %s111, %s125
    %p127 = scmp.eq.s32.totalorder %s17, 0
    %p128 = por %p126, %p127
    %s129 = ssub.s32 %s11, %s18
    %p130 = scmp.eq.s32.totalorder %s129, 0
    %s132 = sadd.s32 %s131, 1
    %s133 = scalar_select %p130, %s131, %s132
    %p136 = pneg %p130
    %p137 = scmp.eq.s32.totalorder %s11, 1
    %p138 = por %p136, %p137
    %p139 = scmp.ne.s32.totalorder %s131, %s134
    %p140 = scmp.eq.s32.totalorder %s11, 0
    %p141 = por %p139, %p140
    %p142 = scmp.ne.s32.totalorder %s131, %s134
    %p143 = scmp.eq.s32.totalorder %s16, 1
    %p144 = por %p142, %p143
    %p145 = scmp.ne.s32.totalorder %s134, %s135
    %p146 = scmp.eq.s32.totalorder %s16, 0
    %p147 = por %p145, %p146
    %p148 = scmp.ne.s32.totalorder %s134, %s135
    %p149 = scmp.eq.s32.totalorder %s17, 1
    %p150 = por %p148, %p149
    %p152 = scmp.ne.s32.totalorder %s135, %s151
    %p153 = scmp.eq.s32.totalorder %s17, 0
    %p154 = por %p152, %p153
    %p155 = scmp.le.s32.totalorder 1, %s11
    %p156 = scmp.lt.s32.totalorder %s11, 3
    %p157 = pnand %p155, %p156
    %p158 = pneg %p157
    // Predicated region
    $region9: #{activation_probe_forward.1} parent=5 // pred_check
      _
    $region10: #{activation_probe_forward.1} parent=5 // pred_check_branch
      %160 = sbr.rel (%p157) target = $region12
    $region11: #{activation_probe_forward.1} parent=5 // pred_region
      %s161 = ssub.s32 %s11, 1
      // Predicated region
      $region13: #{activation_probe_forward.1} parent=11 // pred_check
        %p162 = pneg %p58
      $region14: #{activation_probe_forward.1} parent=11 // pred_check_branch
        %164 = sbr.rel (%p162) target = $region16
      $region15: #{activation_probe_forward.1} parent=11 // pred_region
        _
      $region16: #{activation_probe_forward.1} parent=11 // pred_fallthru
        _
      // Predicated region
      $region17: #{activation_probe_forward.1} parent=11 // pred_check
        %p165 = pneg %p79
      $region18: #{activation_probe_forward.1} parent=11 // pred_check_branch
        %167 = sbr.rel (%p165) target = $region20
      $region19: #{activation_probe_forward.1} parent=11 // pred_region
        _
      $region20: #{activation_probe_forward.1} parent=11 // pred_fallthru
        _
      // Predicated region
      $region21: #{activation_probe_forward.1} parent=11 // pred_check
        %p168 = pneg %p100
      $region22: #{activation_probe_forward.1} parent=11 // pred_check_branch
        %170 = sbr.rel (%p168) target = $region24
      $region23: #{activation_probe_forward.1} parent=11 // pred_region
        _
      $region24: #{activation_probe_forward.1} parent=11 // pred_fallthru
        _
      // Predicated region
      $region25: #{activation_probe_forward.1} parent=11 // pred_check
        %p171 = pneg %p121
      $region26: #{activation_probe_forward.1} parent=11 // pred_check_branch
        %173 = sbr.rel (%p171) target = $region28
      $region27: #{activation_probe_forward.1} parent=11 // pred_region
        _
      $region28: #{activation_probe_forward.1} parent=11 // pred_fallthru
        _
    $region12: #{activation_probe_forward.1} parent=5 // pred_fallthru
      _
    %p174 = scmp.lt.s32.totalorder %s11, 2
    // Predicated region
    $region29: #{activation_probe_forward.1} parent=5 // pred_check
      %p175 = pneg %p174
    $region30: #{activation_probe_forward.1} parent=5 // pred_check_branch
      %177 = sbr.rel (%p175) target = $region32
    $region31: #{activation_probe_forward.1} parent=5 // pred_region
      // Predicated region
      $region33: #{activation_probe_forward.1} parent=31 // pred_check
        %p178 = pneg %p31
      $region34: #{activation_probe_forward.1} parent=31 // pred_check_branch
        %180 = sbr.rel (%p178) target = $region36
      $region35: #{activation_probe_forward.1} parent=31 // pred_region
        %s181 = smul.u32 16, %s11
        %p182 = scmp.lt.s32.totalorder %s181, 31
        %s183 = scalar_select %p182, %s181, 31
        %s184 = smul.addr %s183, 4
        %s185 = scalar_lea.vmem %s0, %s184
        %s186 = smul.u32 16, %s11
      $region36: #{activation_probe_forward.1} parent=31 // pred_fallthru
        _
    $region32: #{activation_probe_forward.1} parent=5 // pred_fallthru
      _
    %p187 = scmp.le.s32.totalorder 1, %s11
    %p188 = scmp.lt.s32.totalorder %s11, 3
    %p189 = pnand %p187, %p188
    %p190 = pneg %p189
    // Predicated region
    $region37: #{activation_probe_forward.1} parent=5 // pred_check
      _
    $region38: #{activation_probe_forward.1} parent=5 // pred_check_branch
      %192 = sbr.rel (%p189) target = $region40
    $region39: #{activation_probe_forward.1} parent=5 // pred_region
      %s193 = ssub.s32 %s11, 1
      %s194 = smul.u32 16, %s16
      %p195 = scmp.lt.s32.totalorder %s194, 31
      %s196 = scalar_select %p195, %s194, 31
      %s197 = smul.addr %s196, 4
      %s198 = scalar_lea.vmem %s0, %s197
      %p199 = pneg %p37
      %p200 = pneg %p34
      %p201 = pneg %p58
      %p202 = pneg %p55
      %p203 = pneg %p79
      %p204 = pneg %p76
      %p205 = pneg %p100
      %p206 = pneg %p97
      %p207 = pneg %p121
      %p208 = pneg %p118
      %p209 = pneg %p147
      %p210 = pneg %p144
      %s211 = smul.u32 16, %s16
      %p212 = scmp.lt.s32.totalorder %s211, 31
      %s213 = scalar_select %p212, %s211, 31
      %s214 = smul.addr %s213, 8
      %s215 = scalar_lea.vmem %s5, %s214
      %s216 = smul.u32 16, %s16
      %p217 = scmp.lt.s32.totalorder %s216, 31
      %s218 = scalar_select %p217, %s216, 31
      %s219 = smul.addr %s218, 4
      %s220 = scalar_lea.vmem %s0, %s219
      %s221 = smul.u32 16, %s16
      %s222 = smul.u32 16, %s16
      %p223 = scmp.lt.s32.totalorder %s222, 31
      %s224 = scalar_select %p223, %s222, 31
      %s225 = smul.addr %s224, 8
      %s226 = scalar_lea.vmem %s5, %s225
      %s227 = smul.u32 16, %s16
      %v229 = vld [vmem:[%s220] sm:$0xf]
      %v230 = vld [vmem:[%s220 + $0x4] sm:$0xf]
      %v231 = vld [vmem:[%s220 + $0x8] sm:$0xf]
      %v232 = vld [vmem:[%s220 + $0xc] sm:$0xf]
      %v233 = vld [vmem:[%s220 + $0x10] sm:$0xf]
      %v234 = vld [vmem:[%s220 + $0x14] sm:$0xf]
      %v235 = vld [vmem:[%s220 + $0x18] sm:$0xf]
      %v236 = vld [vmem:[%s220 + $0x1c] sm:$0xf]
      %v237 = vld [vmem:[%s220 + $0x20] sm:$0xf]
      %v238 = vld [vmem:[%s220 + $0x24] sm:$0xf]
      %v239 = vld [vmem:[%s220 + $0x28] sm:$0xf]
      %v240 = vld [vmem:[%s220 + $0x2c] sm:$0xf]
      %v241 = vld [vmem:[%s220 + $0x30] sm:$0xf]
      %v242 = vld [vmem:[%s220 + $0x34] sm:$0xf]
      %v243 = vld [vmem:[%s220 + $0x38] sm:$0xf]
      %v244 = vld [vmem:[%s220 + $0x3c] sm:$0xf]
      %v245 = vld [vmem:[%s1] sm:$0xf]
      %v246 = vld [vmem:[%s1 + $0x4] sm:$0xf]
      %v247 = vld [vmem:[%s1 + $0x8] sm:$0xf]
      %v248 = vld [vmem:[%s1 + $0xc] sm:$0xf]
      %v249 = vld [vmem:[%s2] sm:$0x1]
      %v251 = vlaneseq
      %v252 = vshrl.u32 %v251, 7
      %v253 = vsub.s32 0, %v252
      %v254 = vrot.slane %v249, %v253
      %v272 = vunpack.c.l.b16 %v229
      %v273 = vunpack.c.l.b16 %v230
      %v274 = vunpack.c.l.b16 %v231
      %v275 = vunpack.c.l.b16 %v232
      %v276 = vunpack.c.l.b16 %v233
      %v277 = vunpack.c.l.b16 %v234
      %v278 = vunpack.c.l.b16 %v235
      %v279 = vunpack.c.l.b16 %v236
      %v280 = vunpack.c.l.b16 %v237
      %v281 = vunpack.c.l.b16 %v238
      %v282 = vunpack.c.l.b16 %v239
      %v283 = vunpack.c.l.b16 %v240
      %v284 = vunpack.c.l.b16 %v241
      %v285 = vunpack.c.l.b16 %v242
      %v286 = vunpack.c.l.b16 %v243
      %v287 = vunpack.c.l.b16 %v244
      %v288 = vpack.c.b16 %v273, %v272
      %v289 = vpack.c.b16 %v275, %v274
      %v290 = vpack.c.b16 %v277, %v276
      %v291 = vpack.c.b16 %v279, %v278
      %v292 = vpack.c.b16 %v281, %v280
      %v293 = vpack.c.b16 %v283, %v282
      %v294 = vpack.c.b16 %v285, %v284
      %v295 = vpack.c.b16 %v287, %v286
      %v300 = vunpack.c.l.b16 %v245
      %v301 = vunpack.c.l.b16 %v246
      %v302 = vunpack.c.l.b16 %v247
      %v303 = vunpack.c.l.b16 %v248
      %v304 = vpack.c.b16 %v301, %v300
      %v305 = vpack.c.b16 %v303, %v302
      %vm308 = vcmask 261120
      %v310 = vsel %vm308, %v288, 0
      %v313 = vsel %vm308, %v289, 0
      %v316 = vsel %vm308, %v290, 0
      %v319 = vsel %vm308, %v291, 0
      %v322 = vsel %vm308, %v292, 0
      %v325 = vsel %vm308, %v293, 0
      %v328 = vsel %vm308, %v294, 0
      %v331 = vsel %vm308, %v295, 0
      %333 = vmatprep.subr.bf16.mxu0 0
      %334 = vmatpush1.bf16.msra.mxu0 %v304
      %335 = vmatprep.subr.bf16.mxu0 0
      %336 = vmatpush1.bf16.msra.mxu0 %v305
      %337 = vmatprep.subr.bf16.mxu0 0
      %338 = vmatpush1.bf16.msra.mxu0 0
      %339 = vmatprep.subr.bf16.mxu0 0
      %340 = vmatpush1.bf16.msra.mxu0 0
      %341 = vmatprep.subr.bf16.mxu0 0
      %342 = vmatpush1.bf16.msra.mxu0 0
      %343 = vmatprep.subr.bf16.mxu0 0
      %344 = vmatpush1.bf16.msra.mxu0 0
      %345 = vmatprep.subr.bf16.mxu0 0
      %346 = vmatpush1.bf16.msra.mxu0 0
      %347 = vmatprep.subr.bf16.mxu0 0
      %348 = vmatpush1.bf16.msra.mxu0 0
      %349 = vmatprep.subr.bf16.mxu0 0
      %350 = vmatpush1.bf16.msra.mxu0 0
      %351 = vmatprep.subr.bf16.mxu0 0
      %352 = vmatpush1.bf16.msra.mxu0 0
      %353 = vmatprep.subr.bf16.mxu0 0
      %354 = vmatpush1.bf16.msra.mxu0 0
      %355 = vmatprep.subr.bf16.mxu0 0
      %356 = vmatpush1.bf16.msra.mxu0 0
      %357 = vmatprep.subr.bf16.mxu0 0
      %358 = vmatpush1.bf16.msra.mxu0 0
      %359 = vmatprep.subr.bf16.mxu0 0
      %360 = vmatpush1.bf16.msra.mxu0 0
      %361 = vmatprep.subr.bf16.mxu0 0
      %362 = vmatpush1.bf16.msra.mxu0 0
      %363 = vmatprep.subr.bf16.mxu0 0
      %364 = vmatpush1.bf16.msra.mxu0 0
      %365 = vmatprep.mubr.bf16.mxu0 0
      %366 = vmatmul.mubr.bf16.gmra.mrb[0].mxu0 %v310
      %v367 = vpop.f32.mrb[0].mxu0
      %v368 = vadd.f32 %v254, %v367
      %v369 = vpop.f32.mrb[0].mxu0
      %v370 = vpop.f32.mrb[0].mxu0
      %v371 = vadd.f32 %v254, %v370
      %v372 = vpop.f32.mrb[0].mxu0
      %373 = vmatprep.mubr.bf16.mxu0 0
      %374 = vmatmul.mubr.bf16.gmra.mrb[0].mxu0 %v313
      %v375 = vpop.f32.mrb[0].mxu0
      %v376 = vadd.f32 %v254, %v375
      %v377 = vpop.f32.mrb[0].mxu0
      %v378 = vpop.f32.mrb[0].mxu0
      %v379 = vadd.f32 %v254, %v378
      %v380 = vpop.f32.mrb[0].mxu0
      %381 = vmatprep.mubr.bf16.mxu0 0
      %382 = vmatmul.mubr.bf16.gmra.mrb[0].mxu0 %v316
      %v383 = vpop.f32.mrb[0].mxu0
      %v384 = vadd.f32 %v254, %v383
      %v385 = vpop.f32.mrb[0].mxu0
      %v386 = vpop.f32.mrb[0].mxu0
      %v387 = vadd.f32 %v254, %v386
      %v388 = vpop.f32.mrb[0].mxu0
      %389 = vmatprep.mubr.bf16.mxu0 0
      %390 = vmatmul.mubr.bf16.gmra.mrb[0].mxu0 %v319
      %v391 = vpop.f32.mrb[0].mxu0
      %v392 = vadd.f32 %v254, %v391
      %v393 = vpop.f32.mrb[0].mxu0
      %v394 = vpop.f32.mrb[0].mxu0
      %v395 = vadd.f32 %v254, %v394
      %v396 = vpop.f32.mrb[0].mxu0
      %397 = vmatprep.mubr.bf16.mxu0 0
      %398 = vmatmul.mubr.bf16.gmra.mrb[0].mxu0 %v322
      %v399 = vpop.f32.mrb[0].mxu0
      %v400 = vadd.f32 %v254, %v399
      %v401 = vpop.f32.mrb[0].mxu0
      %v402 = vpop.f32.mrb[0].mxu0
      %v403 = vadd.f32 %v254, %v402
      %v404 = vpop.f32.mrb[0].mxu0
      %405 = vmatprep.mubr.bf16.mxu0 0
      %406 = vmatmul.mubr.bf16.gmra.mrb[0].mxu0 %v325
      %v407 = vpop.f32.mrb[0].mxu0
      %v408 = vadd.f32 %v254, %v407
      %v409 = vpop.f32.mrb[0].mxu0
      %v410 = vpop.f32.mrb[0].mxu0
      %v411 = vadd.f32 %v254, %v410
      %v412 = vpop.f32.mrb[0].mxu0
      %413 = vmatprep.mubr.bf16.mxu0 0
      %414 = vmatmul.mubr.bf16.gmra.mrb[0].mxu0 %v328
      %v415 = vpop.f32.mrb[0].mxu0
      %v416 = vadd.f32 %v254, %v415
      %v417 = vpop.f32.mrb[0].mxu0
      %v418 = vpop.f32.mrb[0].mxu0
      %v419 = vadd.f32 %v254, %v418
      %v420 = vpop.f32.mrb[0].mxu0
      %421 = vmatprep.mubr.bf16.mxu0 0
      %422 = vmatmul.mubr.bf16.gmra.mrb[0].mxu0 %v331
      %v423 = vpop.f32.mrb[0].mxu0
      %v424 = vadd.f32 %v254, %v423
      %v425 = vpop.f32.mrb[0].mxu0
      %v426 = vpop.f32.mrb[0].mxu0
      %v427 = vadd.f32 %v254, %v426
      %v428 = vpop.f32.mrb[0].mxu0
      %429 = vdwg.mxu0
      %v430 = vmax.f32 %v368, 0.0
      %v431 = vmax.f32 %v371, 0.0
      %v432 = vmax.f32 %v376, 0.0
      %v433 = vmax.f32 %v379, 0.0
      %v434 = vmax.f32 %v384, 0.0
      %v435 = vmax.f32 %v387, 0.0
      %v436 = vmax.f32 %v392, 0.0
      %v437 = vmax.f32 %v395, 0.0
      %v438 = vmax.f32 %v400, 0.0
      %v439 = vmax.f32 %v403, 0.0
      %v440 = vmax.f32 %v408, 0.0
      %v441 = vmax.f32 %v411, 0.0
      %v442 = vmax.f32 %v416, 0.0
      %v443 = vmax.f32 %v419, 0.0
      %v444 = vmax.f32 %v424, 0.0
      %v445 = vmax.f32 %v427, 0.0
      %v446 = vld [vmem:[%s3] sm:$0xff]
      %v447 = vld [vmem:[%s3 + $0x8] sm:$0xff]
      %v448 = vld [vmem:[%s3 + $0x10] sm:$0xff]
      %v449 = vld [vmem:[%s3 + $0x18] sm:$0xff]
      %v450 = vld [vmem:[%s3 + $0x20] sm:$0xff]
      %v451 = vld [vmem:[%s3 + $0x28] sm:$0xff]
      %v452 = vld [vmem:[%s3 + $0x30] sm:$0xff]
      %v453 = vld [vmem:[%s3 + $0x38] sm:$0xff]
      %v454 = vld [vmem:[%s3 + $0x40] sm:$0xff]
      %v455 = vld [vmem:[%s3 + $0x48] sm:$0xff]
      %v456 = vld [vmem:[%s3 + $0x50] sm:$0xff]
      %v457 = vld [vmem:[%s3 + $0x58] sm:$0xff]
      %v458 = vld [vmem:[%s3 + $0x60] sm:$0xff]
      %v459 = vld [vmem:[%s3 + $0x68] sm:$0xff]
      %v460 = vld [vmem:[%s3 + $0x70] sm:$0xff]
      %v461 = vld [vmem:[%s3 + $0x78] sm:$0xff]
      %v462 = vld [vmem:[%s4] sm:$0x1]
      %v464 = vlaneseq
      %v465 = vshrl.u32 %v464, 7
      %v466 = vsub.s32 0, %v465
      %v467 = vrot.slane %v462, %v466
      %469 = vmatprep.subr.mxu0 0.0
      %470 = vmatpush1.msra.mxu0 %v446
      %471 = vmatprep.subr.mxu0 0.0
      %472 = vmatpush1.msra.mxu0 %v447
      %473 = vmatprep.subr.mxu0 0.0
      %474 = vmatpush1.msra.mxu0 %v448
      %475 = vmatprep.subr.mxu0 0.0
      %476 = vmatpush1.msra.mxu0 %v449
      %477 = vmatprep.subr.mxu0 0.0
      %478 = vmatpush1.msra.mxu0 %v450
      %479 = vmatprep.subr.mxu0 0.0
      %480 = vmatpush1.msra.mxu0 %v451
      %481 = vmatprep.subr.mxu0 0.0
      %482 = vmatpush1.msra.mxu0 %v452
      %483 = vmatprep.subr.mxu0 0.0
      %484 = vmatpush1.msra.mxu0 %v453
      %485 = vmatprep.subr.mxu0 0.0
      %486 = vmatpush1.msra.mxu0 %v454
      %487 = vmatprep.subr.mxu0 0.0
      %488 = vmatpush1.msra.mxu0 %v455
      %489 = vmatprep.subr.mxu0 0.0
      %490 = vmatpush1.msra.mxu0 %v456
      %491 = vmatprep.subr.mxu0 0.0
      %492 = vmatpush1.msra.mxu0 %v457
      %493 = vmatprep.subr.mxu0 0.0
      %494 = vmatpush1.msra.mxu0 %v458
      %495 = vmatprep.subr.mxu0 0.0
      %496 = vmatpush1.msra.mxu0 %v459
      %497 = vmatprep.subr.mxu0 0.0
      %498 = vmatpush1.msra.mxu0 %v460
      %499 = vmatprep.subr.mxu0 0.0
      %500 = vmatpush1.msra.mxu0 %v461
      %501 = vmatprep.subr.mxu0 0.0
      %502 = vmatpush1.msra.mxu0 0.0
      %503 = vmatprep.subr.mxu0 0.0
      %504 = vmatpush1.msra.mxu0 0.0
      %505 = vmatprep.subr.mxu0 0.0
      %506 = vmatpush1.msra.mxu0 0.0
      %507 = vmatprep.subr.mxu0 0.0
      %508 = vmatpush1.msra.mxu0 0.0
      %509 = vmatprep.subr.mxu0 0.0
      %510 = vmatpush1.msra.mxu0 0.0
      %511 = vmatprep.subr.mxu0 0.0
      %512 = vmatpush1.msra.mxu0 0.0
      %513 = vmatprep.subr.mxu0 0.0
      %514 = vmatpush1.msra.mxu0 0.0
      %515 = vmatprep.subr.mxu0 0.0
      %516 = vmatpush1.msra.mxu0 0.0
      %517 = vmatprep.subr.mxu0 0.0
      %518 = vmatpush1.msra.mxu0 0.0
      %519 = vmatprep.subr.mxu0 0.0
      %520 = vmatpush1.msra.mxu0 0.0
      %521 = vmatprep.subr.mxu0 0.0
      %522 = vmatpush1.msra.mxu0 0.0
      %523 = vmatprep.subr.mxu0 0.0
      %524 = vmatpush1.msra.mxu0 0.0
      %525 = vmatprep.subr.mxu0 0.0
      %526 = vmatpush1.msra.mxu0 0.0
      %527 = vmatprep.subr.mxu0 0.0
      %528 = vmatpush1.msra.mxu0 0.0
      %529 = vmatprep.subr.mxu0 0.0
      %530 = vmatpush1.msra.mxu0 0.0
      %531 = vmatprep.subr.mxu0 0.0
      %532 = vmatpush1.msra.mxu0 0.0
      %533 = vmatprep.mubr.f32.mxu0 0.0
      %534 = vmatmul.mubr.f32.gmra.mrb[0].mxu0 %v430
      %v535 = vpop.f32.mrb[0].mxu0
      %v536 = vadd.f32 %v467, %v535
      %v537 = vpop.f32.mrb[0].mxu0
      %538 = vmatprep.mubr.f32.mxu0 0.0
      %539 = vmatmul.mubr.f32.gmra.mrb[0].mxu0 %v431
      %v540 = vpop.f32.mrb[0].mxu0
      %v541 = vadd.f32 %v467, %v540
      %v542 = vpop.f32.mrb[0].mxu0
      %543 = vmatprep.mubr.f32.mxu0 0.0
      %544 = vmatmul.mubr.f32.gmra.mrb[0].mxu0 %v432
      %v545 = vpop.f32.mrb[0].mxu0
      %v546 = vadd.f32 %v467, %v545
      %v547 = vpop.f32.mrb[0].mxu0
      %548 = vmatprep.mubr.f32.mxu0 0.0
      %549 = vmatmul.mubr.f32.gmra.mrb[0].mxu0 %v433
      %v550 = vpop.f32.mrb[0].mxu0
      %v551 = vadd.f32 %v467, %v550
      %v552 = vpop.f32.mrb[0].mxu0
      %553 = vmatprep.mubr.f32.mxu0 0.0
      %554 = vmatmul.mubr.f32.gmra.mrb[0].mxu0 %v434
      %v555 = vpop.f32.mrb[0].mxu0
      %v556 = vadd.f32 %v467, %v555
      %v557 = vpop.f32.mrb[0].mxu0
      %558 = vmatprep.mubr.f32.mxu0 0.0
      %559 = vmatmul.mubr.f32.gmra.mrb[0].mxu0 %v435
      %v560 = vpop.f32.mrb[0].mxu0
      %v561 = vadd.f32 %v467, %v560
      %v562 = vpop.f32.mrb[0].mxu0
      %563 = vmatprep.mubr.f32.mxu0 0.0
      %564 = vmatmul.mubr.f32.gmra.mrb[0].mxu0 %v436
      %v565 = vpop.f32.mrb[0].mxu0
      %v566 = vadd.f32 %v467, %v565
      %v567 = vpop.f32.mrb[0].mxu0
      %568 = vmatprep.mubr.f32.mxu0 0.0
      %569 = vmatmul.mubr.f32.gmra.mrb[0].mxu0 %v437
      %v570 = vpop.f32.mrb[0].mxu0
      %v571 = vadd.f32 %v467, %v570
      %v572 = vpop.f32.mrb[0].mxu0
      %573 = vmatprep.mubr.f32.mxu0 0.0
      %574 = vmatmul.mubr.f32.gmra.mrb[0].mxu0 %v438
      %v575 = vpop.f32.mrb[0].mxu0
      %v576 = vadd.f32 %v467, %v575
      %v577 = vpop.f32.mrb[0].mxu0
      %578 = vmatprep.mubr.f32.mxu0 0.0
      %579 = vmatmul.mubr.f32.gmra.mrb[0].mxu0 %v439
      %v580 = vpop.f32.mrb[0].mxu0
      %v581 = vadd.f32 %v467, %v580
      %v582 = vpop.f32.mrb[0].mxu0
      %583 = vmatprep.mubr.f32.mxu0 0.0
      %584 = vmatmul.mubr.f32.gmra.mrb[0].mxu0 %v440
      %v585 = vpop.f32.mrb[0].mxu0
      %v586 = vadd.f32 %v467, %v585
      %v587 = vpop.f32.mrb[0].mxu0
      %588 = vmatprep.mubr.f32.mxu0 0.0
      %589 = vmatmul.mubr.f32.gmra.mrb[0].mxu0 %v441
      %v590 = vpop.f32.mrb[0].mxu0
      %v591 = vadd.f32 %v467, %v590
      %v592 = vpop.f32.mrb[0].mxu0
      %593 = vmatprep.mubr.f32.mxu0 0.0
      %594 = vmatmul.mubr.f32.gmra.mrb[0].mxu0 %v442
      %v595 = vpop.f32.mrb[0].mxu0
      %v596 = vadd.f32 %v467, %v595
      %v597 = vpop.f32.mrb[0].mxu0
      %598 = vmatprep.mubr.f32.mxu0 0.0
      %599 = vmatmul.mubr.f32.gmra.mrb[0].mxu0 %v443
      %v600 = vpop.f32.mrb[0].mxu0
      %v601 = vadd.f32 %v467, %v600
      %v602 = vpop.f32.mrb[0].mxu0
      %603 = vmatprep.mubr.f32.mxu0 0.0
      %604 = vmatmul.mubr.f32.gmra.mrb[0].mxu0 %v444
      %v605 = vpop.f32.mrb[0].mxu0
      %v606 = vadd.f32 %v467, %v605
      %v607 = vpop.f32.mrb[0].mxu0
      %608 = vmatprep.mubr.f32.mxu0 0.0
      %609 = vmatmul.mubr.f32.gmra.mrb[0].mxu0 %v445
      %v610 = vpop.f32.mrb[0].mxu0
      %v611 = vadd.f32 %v467, %v610
      %v612 = vpop.f32.mrb[0].mxu0
      %613 = vdwg.mxu0
      %614 = vst [vmem:[%s226] sm:$0xff] %v536
      %615 = vst [vmem:[%s226 + $0x8] sm:$0xff] %v541
      %616 = vst [vmem:[%s226 + $0x10] sm:$0xff] %v546
      %617 = vst [vmem:[%s226 + $0x18] sm:$0xff] %v551
      %618 = vst [vmem:[%s226 + $0x20] sm:$0xff] %v556
      %619 = vst [vmem:[%s226 + $0x28] sm:$0xff] %v561
      %620 = vst [vmem:[%s226 + $0x30] sm:$0xff] %v566
      %621 = vst [vmem:[%s226 + $0x38] sm:$0xff] %v571
      %622 = vst [vmem:[%s226 + $0x40] sm:$0xff] %v576
      %623 = vst [vmem:[%s226 + $0x48] sm:$0xff] %v581
      %624 = vst [vmem:[%s226 + $0x50] sm:$0xff] %v586
      %625 = vst [vmem:[%s226 + $0x58] sm:$0xff] %v591
      %626 = vst [vmem:[%s226 + $0x60] sm:$0xff] %v596
      %627 = vst [vmem:[%s226 + $0x68] sm:$0xff] %v601
      %628 = vst [vmem:[%s226 + $0x70] sm:$0xff] %v606
      %629 = vst [vmem:[%s226 + $0x78] sm:$0xff] %v611
      %s630 = smul.u32 16, %s16
      %p631 = scmp.lt.s32.totalorder %s630, 31
      %s632 = scalar_select %p631, %s630, 31
      %s633 = smul.addr %s632, 8
      %s634 = scalar_lea.vmem %s5, %s633
      // Predicated region
      $region41: #{activation_probe_forward.1} parent=39 // pred_check
        %p635 = pneg %p144
      $region42: #{activation_probe_forward.1} parent=39 // pred_check_branch
        %637 = sbr.rel (%p635) target = $region44
      $region43: #{activation_probe_forward.1} parent=39 // pred_region
        %s638 = smul.u32 16, %s16
      $region44: #{activation_probe_forward.1} parent=39 // pred_fallthru
        _
    $region40: #{activation_probe_forward.1} parent=5 // pred_fallthru
      _
    %p639 = scmp.le.s32.totalorder 2, %s11
    // Predicated region
    $region45: #{activation_probe_forward.1} parent=5 // pred_check
      %p640 = pneg %p639
    $region46: #{activation_probe_forward.1} parent=5 // pred_check_branch
      %642 = sbr.rel (%p640) target = $region48
    $region47: #{activation_probe_forward.1} parent=5 // pred_region
      %s643 = ssub.s32 %s11, 2
      // Predicated region
      $region49: #{activation_probe_forward.1} parent=47 // pred_check
        %p644 = pneg %p150
      $region50: #{activation_probe_forward.1} parent=47 // pred_check_branch
        %646 = sbr.rel (%p644) target = $region52
      $region51: #{activation_probe_forward.1} parent=47 // pred_region
        %s647 = smul.u32 16, %s17
        %p648 = scmp.lt.s32.totalorder %s647, 31
        %s649 = scalar_select %p648, %s647, 31
        %s650 = smul.addr %s649, 8
        %s651 = scalar_lea.vmem %s5, %s650
      $region52: #{activation_probe_forward.1} parent=47 // pred_fallthru
        _
    $region48: #{activation_probe_forward.1} parent=5 // pred_fallthru
      _
  $region6: #{activation_probe_forward.1} parent=0 // loop_footer
    %s15 = sadd.s32 1, %s11
  $region7: #{activation_probe_forward.1} parent=0 // loop_footer_branch
    %10 = sbr.rel target = $region3
  $region8: #{activation_probe_forward.1} parent=0 // loop_exit
    _

</llo_original>
